<compile_context>
chip_gen: v7x
topology: tpu7x:2x2x1
jax: 0.10.0
libtpu: 0.0.40
codegen_flags: <defaults>
</compile_context>

<pallas_src>
import jax
import jax.numpy as jnp
from jax.experimental import pallas as pl
from jax.experimental.pallas import tpu as pltpu


# --------------------------------------------------------------------------- #
# Kernel
# --------------------------------------------------------------------------- #
def twinq_kernel(state_ref, action_ref,
                 w1s_ref, w1a_ref, b1_ref,            # fused layer-1 (both heads)
                 w2q1_ref, b2q1_ref, w2q2_ref, b2q2_ref,
                 w3q1_ref, b3q1_ref, w3q2_ref, b3q2_ref,
                 o_ref):
    """Per batch-tile: min(MLP_q1(sa), MLP_q2(sa)). Weights stay resident in VMEM."""
    H = w2q1_ref.shape[0]

    # In-kernel bf16 cast (inputs arrive in their original f32 dtype).
    s = state_ref[...].astype(jnp.bfloat16)     # [tile_b, S]
    a = action_ref[...].astype(jnp.bfloat16)    # [tile_b, A]

    # Layer 1 for BOTH heads in one (in, 2H) matmul; concat fused by splitting W1.
    h = (jnp.dot(s, w1s_ref[...], preferred_element_type=jnp.float32)
         + jnp.dot(a, w1a_ref[...], preferred_element_type=jnp.float32)
         + b1_ref[...])
    # Single bf16 cast right after the ReLU: the f32 [tile_b, 2H] buffer dies here.
    h = jnp.maximum(h, 0.0).astype(jnp.bfloat16)
    h_q1 = h[:, :H]                              # static lane slices
    h_q2 = h[:, H:]

    def head(hid, w2, b2, w3_row, b3):
        g = jnp.dot(hid, w2, preferred_element_type=jnp.float32) + b2
        g = jnp.maximum(g, 0.0)
        # Final (H -> 1) layer as VPU multiply + lane reduction (keeps MXU free).
        return jnp.sum(g * w3_row, axis=-1, keepdims=True) + b3

    q1 = head(h_q1, w2q1_ref[...], b2q1_ref[...], w3q1_ref[...], b3q1_ref[...])
    q2 = head(h_q2, w2q2_ref[...], b2q2_ref[...], w3q2_ref[...], b3q2_ref[...])
    o_ref[...] = jnp.minimum(q1, q2)             # f32 [tile_b, 1]


# --------------------------------------------------------------------------- #
# Helpers
# --------------------------------------------------------------------------- #
def _round_up(x, m):
    return (x + m - 1) // m * m


def _has_two_tensorcores():
    """True on v7x-class chips (2 TensorCores per chip)."""
    try:
        kind = jax.devices()[0].device_kind.lower()
    except Exception:  # pragma: no cover - defensive
        return False
    return "7" in kind


def _pick_tile(B, S, A, H, max_tile, vmem_budget_bytes):
    """Pick a batch tile: biggest that fits the VMEM budget; >=2 steps on v7x."""
    def footprint(t):
        # double-buffered f32 activation tiles + output tiles
        acts = 2 * 2 * t * (S + A) * 4 + 2 * t * 4
        # resident weights (assume x2 for buffering headroom)
        weights = 2 * ((S + A) * 2 * H * 2 + 2 * H * H * 2 + 8 * H * 4 + 8)
        # intermediates: h f32 + h bf16 + per-head g f32
        inter = t * 2 * H * 4 + t * 2 * H * 2 + 2 * t * H * 4
        return acts + weights + inter

    t_cap = max(128, _round_up(max_tile, 128))
    while t_cap > 128 and footprint(t_cap) > vmem_budget_bytes:
        t_cap //= 2

    if B <= t_cap:
        # Whole batch fits one tile. On v7x split so both TensorCores get work.
        if _has_two_tensorcores() and B >= 256:
            return _round_up((B + 1) // 2, 16)
        return B  # single full-extent block (always layout-legal)
    return t_cap  # multiple of 128


# --------------------------------------------------------------------------- #
# Parameter construction (mirrors PyTorch nn.Linear default init)
# --------------------------------------------------------------------------- #
def _init_linear(key, fan_in, fan_out):
    kw, kb = jax.random.split(key)
    bound = 1.0 / float(fan_in) ** 0.5
    w = jax.random.uniform(kw, (fan_in, fan_out), jnp.float32, -bound, bound)
    b = jax.random.uniform(kb, (1, fan_out), jnp.float32, -bound, bound)
    return w, b


def make_twinq_params(key, state_dim, action_dim, hidden_dim=256, n_hidden=2):
    assert n_hidden == 2, "kernel is specialized for n_hidden=2 (3 linear layers)"
    dims = [state_dim + action_dim] + [hidden_dim] * n_hidden + [1]
    params = []
    for _q in range(2):  # q1 then q2
        for i in range(len(dims) - 1):
            key, sub = jax.random.split(key)
            params.extend(_init_linear(sub, dims[i], dims[i + 1]))
    return params  # [w1a,b1a,w2a,b2a,w3a,b3a, w1b,b1b,w2b,b2b,w3b,b3b]


# --------------------------------------------------------------------------- #
# Wrapper
# --------------------------------------------------------------------------- #
def twinq_forward(state, action, params, tile_b=2048):
    """min(q1, q2) of shape [B]; matmuls/ReLU/min run inside the Pallas kernel."""
    B, S = state.shape
    A = action.shape[1]
    (w1q1, b1q1, w2q1, b2q1, w3q1, b3q1,
     w1q2, b1q2, w2q2, b2q2, w3q2, b3q2) = params
    H = w2q1.shape[0]

    # --- kernel-layout params (tiny; folds once under jit) -------------------
    # Layer-1: split rows by state/action and concat both heads' columns -> (·, 2H).
    # bf16 weights are a deliberate choice (IQL critic); f32 fits VMEM if needed.
    w1s = jnp.concatenate([w1q1[:S], w1q2[:S]], axis=1).astype(jnp.bfloat16)
    w1a = jnp.concatenate([w1q1[S:], w1q2[S:]], axis=1).astype(jnp.bfloat16)
    b1 = jnp.concatenate([b1q1, b1q2], axis=1).astype(jnp.float32)     # (1, 2H)
    w2q1_b = w2q1.astype(jnp.bfloat16)
    w2q2_b = w2q2.astype(jnp.bfloat16)
    # Final layer kept in f32 (VPU path), stored as a lane row (1, H).
    w3q1_r = w3q1.T.astype(jnp.float32)
    w3q2_r = w3q2.T.astype(jnp.float32)

    # --- batch tiling (no wrapper-side pad/cast; ragged tail handled by Pallas)
    vmem_limit = 32 * 1024 * 1024
    tile = _pick_tile(B, S, A, H, tile_b, vmem_budget_bytes=int(0.75 * vmem_limit))
    grid = (pl.cdiv(B, tile),)

    def resident(x):  # full-array block, constant index_map -> fetched once
        return pl.BlockSpec(x.shape, lambda i: (0,) * x.ndim)

    in_specs = [
        pl.BlockSpec((tile, S), lambda i: (i, 0)),
        pl.BlockSpec((tile, A), lambda i: (i, 0)),
        resident(w1s), resident(w1a), resident(b1),
        resident(w2q1_b), resident(b2q1), resident(w2q2_b), resident(b2q2),
        resident(w3q1_r), resident(b3q1), resident(w3q2_r), resident(b3q2),
    ]
    out_specs = pl.BlockSpec((tile, 1), lambda i: (i, 0))

    in_dim = S + A
    flops = 2 * B * (in_dim * 2 * H + 2 * H * H + 2 * H)
    bytes_accessed = (B * in_dim * 4                         # f32 activations in
                      + B * 4                                # f32 q out
                      + (in_dim * 2 * H + 2 * H * H) * 2     # bf16 weights
                      + (2 * H + 2 * H + 2 * H + 2) * 4)     # f32 biases + w3 rows
    cost = pl.CostEstimate(flops=flops, transcendentals=0,
                           bytes_accessed=bytes_accessed)

    out = pl.pallas_call(
        twinq_kernel,
        out_shape=jax.ShapeDtypeStruct((B, 1), jnp.float32),
        grid=grid,
        in_specs=in_specs,
        out_specs=out_specs,
        compiler_params=pltpu.CompilerParams(
            dimension_semantics=("parallel",),    # megacore sharding on v7x
            vmem_limit_bytes=vmem_limit),
        cost_estimate=cost,
    )(state, action, w1s, w1a, b1,
      w2q1_b, b2q1, w2q2_b, b2q2,
      w3q1_r, b3q1, w3q2_r, b3q2)

    return out[:, 0]   # squeeze(-1) -> [B]


# --------------------------------------------------------------------------- #
# Reference (mirrors the kernel's bf16-matmul / f32-accumulate math)
# --------------------------------------------------------------------------- #
def _reference_forward(state, action, params):
    sa = jnp.concatenate([state, action], axis=1)
    (w1q1, b1q1, w2q1, b2q1, w3q1, b3q1,
     w1q2, b1q2, w2q2, b2q2, w3q2, b3q2) = params

    def mm(x, w):
        return jnp.dot(x.astype(jnp.bfloat16), w.astype(jnp.bfloat16),
                       preferred_element_type=jnp.float32)

    def mlp(w1, b1, w2, b2, w3, b3):
        h = jnp.maximum(mm(sa, w1) + b1, 0.0)
        h = jnp.maximum(mm(h, w2) + b2, 0.0)
        return (h @ w3 + b3)[:, 0]              # final layer in f32, as in the kernel

    return jnp.minimum(mlp(w1q1, b1q1, w2q1, b2q1, w3q1, b3q1),
                       mlp(w1q2, b1q2, w2q2, b2q2, w3q2, b3q2))


if __name__ == "__main__":
    key = jax.random.PRNGKey(0)
    k_state, k_action, k_params = jax.random.split(key, 3)

    batch, state_dim, action_dim, hidden_dim = 8, 17, 6, 32
    state = jax.random.normal(k_state, (batch, state_dim), jnp.float32)
    action = jax.random.normal(k_action, (batch, action_dim), jnp.float32)
    params = make_twinq_params(k_params, state_dim, action_dim,
                               hidden_dim=hidden_dim, n_hidden=2)

    fwd = jax.jit(twinq_forward)
    q_min = fwd(state, action, params)
    jax.block_until_ready(q_min)

    q_ref = _reference_forward(state, action, params)
    assert q_min.shape == (batch,)
    assert jnp.allclose(q_min, q_ref, atol=1e-2, rtol=1e-2), (
        float(jnp.max(jnp.abs(q_min - q_ref))))

    print("KERNEL_OK")
</pallas_src>

<mosaic_0001>
module attributes {stable_mosaic.version = 11 : i64} {
  func.func @twinq_kernel(%arg0: i32, %arg1: memref<8x17xf32, #tpu.memory_space<vmem>>, %arg2: memref<8x6xf32, #tpu.memory_space<vmem>>, %arg3: memref<17x64xbf16, #tpu.memory_space<vmem>>, %arg4: memref<6x64xbf16, #tpu.memory_space<vmem>>, %arg5: memref<1x64xf32, #tpu.memory_space<vmem>>, %arg6: memref<32x32xbf16, #tpu.memory_space<vmem>>, %arg7: memref<1x32xf32, #tpu.memory_space<vmem>>, %arg8: memref<32x32xbf16, #tpu.memory_space<vmem>>, %arg9: memref<1x32xf32, #tpu.memory_space<vmem>>, %arg10: memref<1x32xf32, #tpu.memory_space<vmem>>, %arg11: memref<1x1xf32, #tpu.memory_space<vmem>>, %arg12: memref<1x32xf32, #tpu.memory_space<vmem>>, %arg13: memref<1x1xf32, #tpu.memory_space<vmem>>, %arg14: memref<8x1xf32, #tpu.memory_space<vmem>>) attributes {dimension_semantics = [#tpu.dimension_semantics<parallel>], iteration_bounds = array<i64: 1>, scalar_prefetch = 0 : i64, scratch_operands = 0 : i64, tpu.core_type = #tpu.core_type<tc>, window_params = [{transform_indices = @transform_0, window_bounds = array<i64: 8, 17>}, {transform_indices = @transform_1, window_bounds = array<i64: 8, 6>}, {pipeline_mode = #tpu.pipeline_mode<synchronous>, transform_indices = @transform_2, window_bounds = array<i64: 17, 64>}, {pipeline_mode = #tpu.pipeline_mode<synchronous>, transform_indices = @transform_3, window_bounds = array<i64: 6, 64>}, {pipeline_mode = #tpu.pipeline_mode<synchronous>, transform_indices = @transform_4, window_bounds = array<i64: 1, 64>}, {pipeline_mode = #tpu.pipeline_mode<synchronous>, transform_indices = @transform_5, window_bounds = array<i64: 32, 32>}, {pipeline_mode = #tpu.pipeline_mode<synchronous>, transform_indices = @transform_6, window_bounds = array<i64: 1, 32>}, {pipeline_mode = #tpu.pipeline_mode<synchronous>, transform_indices = @transform_7, window_bounds = array<i64: 32, 32>}, {pipeline_mode = #tpu.pipeline_mode<synchronous>, transform_indices = @transform_8, window_bounds = array<i64: 1, 32>}, {pipeline_mode = #tpu.pipeline_mode<synchronous>, transform_indices = @transform_9, window_bounds = array<i64: 1, 32>}, {pipeline_mode = #tpu.pipeline_mode<synchronous>, transform_indices = @transform_10, window_bounds = array<i64: 1, 1>}, {pipeline_mode = #tpu.pipeline_mode<synchronous>, transform_indices = @transform_11, window_bounds = array<i64: 1, 32>}, {pipeline_mode = #tpu.pipeline_mode<synchronous>, transform_indices = @transform_12, window_bounds = array<i64: 1, 1>}, {transform_indices = @transform_13, window_bounds = array<i64: 8, 1>}]} {
    %c0 = arith.constant 0 : index
    %c0_0 = arith.constant 0 : index
    %0 = vector.load %arg1[%c0, %c0_0] : memref<8x17xf32, #tpu.memory_space<vmem>>, vector<8x17xf32>
    %1 = arith.truncf %0 : vector<8x17xf32> to vector<8x17xbf16>
    %c0_1 = arith.constant 0 : index
    %c0_2 = arith.constant 0 : index
    %2 = vector.load %arg2[%c0_1, %c0_2] : memref<8x6xf32, #tpu.memory_space<vmem>>, vector<8x6xf32>
    %3 = arith.truncf %2 : vector<8x6xf32> to vector<8x6xbf16>
    %c0_3 = arith.constant 0 : index
    %c0_4 = arith.constant 0 : index
    %4 = vector.load %arg3[%c0_3, %c0_4] : memref<17x64xbf16, #tpu.memory_space<vmem>>, vector<17x64xbf16>
    %cst = arith.constant dense<0.000000e+00> : vector<8x64xf32>
    %5 = tpu.matmul %1, %4, %cst {dimension_numbers = #tpu.dot_dimension_numbers<[1], [0], [0], [1], [0, 0, 1, 1], [], []>} : vector<8x17xbf16>, vector<17x64xbf16>, vector<8x64xf32> -> vector<8x64xf32>
    %c0_5 = arith.constant 0 : index
    %c0_6 = arith.constant 0 : index
    %6 = vector.load %arg4[%c0_5, %c0_6] : memref<6x64xbf16, #tpu.memory_space<vmem>>, vector<6x64xbf16>
    %cst_7 = arith.constant dense<0.000000e+00> : vector<8x64xf32>
    %7 = tpu.matmul %3, %6, %cst_7 {dimension_numbers = #tpu.dot_dimension_numbers<[1], [0], [0], [1], [0, 0, 1, 1], [], []>} : vector<8x6xbf16>, vector<6x64xbf16>, vector<8x64xf32> -> vector<8x64xf32>
    %8 = arith.addf %5, %7 : vector<8x64xf32>
    %c0_8 = arith.constant 0 : index
    %c0_9 = arith.constant 0 : index
    %9 = vector.load %arg5[%c0_8, %c0_9] : memref<1x64xf32, #tpu.memory_space<vmem>>, vector<1x64xf32>
    %10 = vector.broadcast %9 : vector<1x64xf32> to vector<8x64xf32>
    %11 = arith.addf %8, %10 : vector<8x64xf32>
    %cst_10 = arith.constant 0.000000e+00 : f32
    %12 = vector.broadcast %cst_10 : f32 to vector<8x64xf32>
    %13 = arith.maximumf %11, %12 : vector<8x64xf32>
    %14 = arith.truncf %13 : vector<8x64xf32> to vector<8x64xbf16>
    %15 = vector.extract_strided_slice %14 {offsets = [0, 0], sizes = [8, 32], strides = [1, 1]} : vector<8x64xbf16> to vector<8x32xbf16>
    %16 = vector.extract_strided_slice %14 {offsets = [0, 32], sizes = [8, 32], strides = [1, 1]} : vector<8x64xbf16> to vector<8x32xbf16>
    %c0_11 = arith.constant 0 : index
    %c0_12 = arith.constant 0 : index
    %17 = vector.load %arg6[%c0_11, %c0_12] : memref<32x32xbf16, #tpu.memory_space<vmem>>, vector<32x32xbf16>
    %c0_13 = arith.constant 0 : index
    %c0_14 = arith.constant 0 : index
    %18 = vector.load %arg7[%c0_13, %c0_14] : memref<1x32xf32, #tpu.memory_space<vmem>>, vector<1x32xf32>
    %c0_15 = arith.constant 0 : index
    %c0_16 = arith.constant 0 : index
    %19 = vector.load %arg10[%c0_15, %c0_16] : memref<1x32xf32, #tpu.memory_space<vmem>>, vector<1x32xf32>
    %c0_17 = arith.constant 0 : index
    %c0_18 = arith.constant 0 : index
    %20 = vector.load %arg11[%c0_17, %c0_18] : memref<1x1xf32, #tpu.memory_space<vmem>>, vector<1x1xf32>
    %cst_19 = arith.constant dense<0.000000e+00> : vector<8x32xf32>
    %21 = tpu.matmul %15, %17, %cst_19 {dimension_numbers = #tpu.dot_dimension_numbers<[1], [0], [0], [1], [0, 0, 1, 1], [], []>} : vector<8x32xbf16>, vector<32x32xbf16>, vector<8x32xf32> -> vector<8x32xf32>
    %22 = vector.broadcast %18 : vector<1x32xf32> to vector<8x32xf32>
    %23 = arith.addf %21, %22 : vector<8x32xf32>
    %cst_20 = arith.constant 0.000000e+00 : f32
    %24 = vector.broadcast %cst_20 : f32 to vector<8x32xf32>
    %25 = arith.maximumf %23, %24 : vector<8x32xf32>
    %26 = vector.broadcast %19 : vector<1x32xf32> to vector<8x32xf32>
    %27 = arith.mulf %25, %26 : vector<8x32xf32>
    %cst_21 = arith.constant dense<0.000000e+00> : vector<8xf32>
    %28 = vector.multi_reduction <add>, %27, %cst_21 [1] : vector<8x32xf32> to vector<8xf32>
    %29 = vector.shape_cast %28 : vector<8xf32> to vector<8x1xf32>
    %30 = vector.broadcast %20 : vector<1x1xf32> to vector<8x1xf32>
    %31 = arith.addf %29, %30 : vector<8x1xf32>
    %c0_22 = arith.constant 0 : index
    %c0_23 = arith.constant 0 : index
    %32 = vector.load %arg8[%c0_22, %c0_23] : memref<32x32xbf16, #tpu.memory_space<vmem>>, vector<32x32xbf16>
    %c0_24 = arith.constant 0 : index
    %c0_25 = arith.constant 0 : index
    %33 = vector.load %arg9[%c0_24, %c0_25] : memref<1x32xf32, #tpu.memory_space<vmem>>, vector<1x32xf32>
    %c0_26 = arith.constant 0 : index
    %c0_27 = arith.constant 0 : index
    %34 = vector.load %arg12[%c0_26, %c0_27] : memref<1x32xf32, #tpu.memory_space<vmem>>, vector<1x32xf32>
    %c0_28 = arith.constant 0 : index
    %c0_29 = arith.constant 0 : index
    %35 = vector.load %arg13[%c0_28, %c0_29] : memref<1x1xf32, #tpu.memory_space<vmem>>, vector<1x1xf32>
    %cst_30 = arith.constant dense<0.000000e+00> : vector<8x32xf32>
    %36 = tpu.matmul %16, %32, %cst_30 {dimension_numbers = #tpu.dot_dimension_numbers<[1], [0], [0], [1], [0, 0, 1, 1], [], []>} : vector<8x32xbf16>, vector<32x32xbf16>, vector<8x32xf32> -> vector<8x32xf32>
    %37 = vector.broadcast %33 : vector<1x32xf32> to vector<8x32xf32>
    %38 = arith.addf %36, %37 : vector<8x32xf32>
    %cst_31 = arith.constant 0.000000e+00 : f32
    %39 = vector.broadcast %cst_31 : f32 to vector<8x32xf32>
    %40 = arith.maximumf %38, %39 : vector<8x32xf32>
    %41 = vector.broadcast %34 : vector<1x32xf32> to vector<8x32xf32>
    %42 = arith.mulf %40, %41 : vector<8x32xf32>
    %cst_32 = arith.constant dense<0.000000e+00> : vector<8xf32>
    %43 = vector.multi_reduction <add>, %42, %cst_32 [1] : vector<8x32xf32> to vector<8xf32>
    %44 = vector.shape_cast %43 : vector<8xf32> to vector<8x1xf32>
    %45 = vector.broadcast %35 : vector<1x1xf32> to vector<8x1xf32>
    %46 = arith.addf %44, %45 : vector<8x1xf32>
    %47 = arith.minimumf %31, %46 : vector<8x1xf32>
    %c0_33 = arith.constant 0 : index
    %c0_34 = arith.constant 0 : index
    %48 = vector.load %arg14[%c0_33, %c0_34] : memref<8x1xf32, #tpu.memory_space<vmem>>, vector<8x1xf32>
    tpu.vector_store %arg14[%c0_33, %c0_34], %47 {strides = array<i32>} : memref<8x1xf32, #tpu.memory_space<vmem>>, vector<8x1xf32>,
    return
  }
  func.func @transform_0(%arg0: i32) -> (i32, i32) {
    %c0_i32 = arith.constant 0 : i32
    %c0_i32_0 = arith.constant 0 : i32
    return %arg0, %c0_i32 : i32, i32
  }
  func.func @transform_1(%arg0: i32) -> (i32, i32) {
    %c0_i32 = arith.constant 0 : i32
    %c0_i32_0 = arith.constant 0 : i32
    return %arg0, %c0_i32 : i32, i32
  }
  func.func @transform_2(%arg0: i32) -> (i32, i32) {
    %c0_i32 = arith.constant 0 : i32
    %c0_i32_0 = arith.constant 0 : i32
    %c0_i32_1 = arith.constant 0 : i32
    return %c0_i32, %c0_i32_0 : i32, i32
  }
  func.func @transform_3(%arg0: i32) -> (i32, i32) {
    %c0_i32 = arith.constant 0 : i32
    %c0_i32_0 = arith.constant 0 : i32
    %c0_i32_1 = arith.constant 0 : i32
    return %c0_i32, %c0_i32_0 : i32, i32
  }
  func.func @transform_4(%arg0: i32) -> (i32, i32) {
    %c0_i32 = arith.constant 0 : i32
    %c0_i32_0 = arith.constant 0 : i32
    %c0_i32_1 = arith.constant 0 : i32
    return %c0_i32, %c0_i32_0 : i32, i32
  }
  func.func @transform_5(%arg0: i32) -> (i32, i32) {
    %c0_i32 = arith.constant 0 : i32
    %c0_i32_0 = arith.constant 0 : i32
    %c0_i32_1 = arith.constant 0 : i32
    return %c0_i32, %c0_i32_0 : i32, i32
  }
  func.func @transform_6(%arg0: i32) -> (i32, i32) {
    %c0_i32 = arith.constant 0 : i32
    %c0_i32_0 = arith.constant 0 : i32
    %c0_i32_1 = arith.constant 0 : i32
    return %c0_i32, %c0_i32_0 : i32, i32
  }
  func.func @transform_7(%arg0: i32) -> (i32, i32) {
    %c0_i32 = arith.constant 0 : i32
    %c0_i32_0 = arith.constant 0 : i32
    %c0_i32_1 = arith.constant 0 : i32
    return %c0_i32, %c0_i32_0 : i32, i32
  }
  func.func @transform_8(%arg0: i32) -> (i32, i32) {
    %c0_i32 = arith.constant 0 : i32
    %c0_i32_0 = arith.constant 0 : i32
    %c0_i32_1 = arith.constant 0 : i32
    return %c0_i32, %c0_i32_0 : i32, i32
  }
  func.func @transform_9(%arg0: i32) -> (i32, i32) {
    %c0_i32 = arith.constant 0 : i32
    %c0_i32_0 = arith.constant 0 : i32
    %c0_i32_1 = arith.constant 0 : i32
    return %c0_i32, %c0_i32_0 : i32, i32
  }
  func.func @transform_10(%arg0: i32) -> (i32, i32) {
    %c0_i32 = arith.constant 0 : i32
    %c0_i32_0 = arith.constant 0 : i32
    %c0_i32_1 = arith.constant 0 : i32
    return %c0_i32, %c0_i32_0 : i32, i32
  }
  func.func @transform_11(%arg0: i32) -> (i32, i32) {
    %c0_i32 = arith.constant 0 : i32
    %c0_i32_0 = arith.constant 0 : i32
    %c0_i32_1 = arith.constant 0 : i32
    return %c0_i32, %c0_i32_0 : i32, i32
  }
  func.func @transform_12(%arg0: i32) -> (i32, i32) {
    %c0_i32 = arith.constant 0 : i32
    %c0_i32_0 = arith.constant 0 : i32
    %c0_i32_1 = arith.constant 0 : i32
    return %c0_i32, %c0_i32_0 : i32, i32
  }
  func.func @transform_13(%arg0: i32) -> (i32, i32) {
    %c0_i32 = arith.constant 0 : i32
    %c0_i32_0 = arith.constant 0 : i32
    return %arg0, %c0_i32 : i32, i32
  }
}

</mosaic_0001>

<llo_original>
// kernel: twinq_forward.1
$region0: #{twinq_forward.1}
  #allocation0 [shape = 'u32[]', space=smem, size = 0x4, offset = 0x4, fixed_abs, tag = 'smem constant byte address 0x4 - core index']
  #allocation1 [shape = 'u32[144,128]{1,0:T(1,128)}', space=vmem, size = 0x12000, scoped, tag = 'internal scratch']
  #allocation2 [shape = 'f32[1,1]{1,0:T(1,128)S(1)}', space=vmem, size = 0x200, scoped, tag = 'scoped memory for twinq_forward.1']
  #allocation3 [shape = 'f32[1,1]{1,0:T(1,128)S(1)}', space=vmem, size = 0x200, scoped, tag = 'scoped memory for twinq_forward.1']
  %s0 = inlined_call_operand.vmem [shape: f32[8,17], index: 0, kind: input, shape index: {}]
  %s1 = inlined_call_operand.vmem [shape: f32[8,6], index: 1, kind: input, shape index: {}]
  %s2 = inlined_call_operand.vmem [shape: bf16[17,64], index: 2, kind: input, shape index: {}]
  %s3 = inlined_call_operand.vmem [shape: bf16[6,64], index: 3, kind: input, shape index: {}]
  %s4 = inlined_call_operand.vmem [shape: f32[1,64], index: 4, kind: input, shape index: {}]
  %s5 = inlined_call_operand.vmem [shape: bf16[32,32], index: 5, kind: input, shape index: {}]
  %s6 = inlined_call_operand.vmem [shape: f32[1,32], index: 6, kind: input, shape index: {}]
  %s7 = inlined_call_operand.vmem [shape: bf16[32,32], index: 7, kind: input, shape index: {}]
  %s8 = inlined_call_operand.vmem [shape: f32[1,32], index: 8, kind: input, shape index: {}]
  %s9 = inlined_call_operand.vmem [shape: f32[1,32], index: 9, kind: input, shape index: {}]
  %s10 = inlined_call_operand.<no memory space> [shape: f32[1,1], index: 10, kind: input, shape index: {}]
  %s11 = inlined_call_operand.vmem [shape: f32[1,32], index: 11, kind: input, shape index: {}]
  %s12 = inlined_call_operand.<no memory space> [shape: f32[1,1], index: 12, kind: input, shape index: {}]
  %s13 = inlined_call_operand.vmem [shape: f32[8,1], index: 13, kind: output, shape index: {}]
  %s14 = sld [smem:[#allocation0]]
  $region62: #{twinq_forward.1} parent=0
    _
  %s16 = ssub.s32 1, %s14
  %s17 = scalar_select 0, %s16, %s14
  %v18 = vstv %s10
  %19 = vst [vmem:[#allocation2] sm:$0x1] %v18
  %v20 = vstv %s12
  %21 = vst [vmem:[#allocation3] sm:$0x1] %v20
  // Predicated region
  $region2: #{twinq_forward.1} parent=0 // pred_check
    _
  $region3: #{twinq_forward.1} parent=0 // pred_check_branch
    %23 = sbr.rel (0) target = $region5
  $region4: #{twinq_forward.1} parent=0 // pred_region
    _
  $region5: #{twinq_forward.1} parent=0 // pred_fallthru
    _
  // Predicated region
  $region6: #{twinq_forward.1} parent=0 // pred_check
    _
  $region7: #{twinq_forward.1} parent=0 // pred_check_branch
    %25 = sbr.rel (0) target = $region9
  $region8: #{twinq_forward.1} parent=0 // pred_region
    _
  $region9: #{twinq_forward.1} parent=0 // pred_fallthru
    _
  // Predicated region
  $region10: #{twinq_forward.1} parent=0 // pred_check
    _
  $region11: #{twinq_forward.1} parent=0 // pred_check_branch
    %27 = sbr.rel (0) target = $region13
  $region12: #{twinq_forward.1} parent=0 // pred_region
    _
  $region13: #{twinq_forward.1} parent=0 // pred_fallthru
    _
  // Predicated region
  $region14: #{twinq_forward.1} parent=0 // pred_check
    _
  $region15: #{twinq_forward.1} parent=0 // pred_check_branch
    %29 = sbr.rel (0) target = $region17
  $region16: #{twinq_forward.1} parent=0 // pred_region
    _
  $region17: #{twinq_forward.1} parent=0 // pred_fallthru
    _
  // Predicated region
  $region18: #{twinq_forward.1} parent=0 // pred_check
    _
  $region19: #{twinq_forward.1} parent=0 // pred_check_branch
    %31 = sbr.rel (0) target = $region21
  $region20: #{twinq_forward.1} parent=0 // pred_region
    _
  $region21: #{twinq_forward.1} parent=0 // pred_fallthru
    _
  // Predicated region
  $region22: #{twinq_forward.1} parent=0 // pred_check
    _
  $region23: #{twinq_forward.1} parent=0 // pred_check_branch
    %33 = sbr.rel (0) target = $region25
  $region24: #{twinq_forward.1} parent=0 // pred_region
    _
  $region25: #{twinq_forward.1} parent=0 // pred_fallthru
    _
  // Predicated region
  $region26: #{twinq_forward.1} parent=0 // pred_check
    _
  $region27: #{twinq_forward.1} parent=0 // pred_check_branch
    %35 = sbr.rel (0) target = $region29
  $region28: #{twinq_forward.1} parent=0 // pred_region
    _
  $region29: #{twinq_forward.1} parent=0 // pred_fallthru
    _
  // Predicated region
  $region30: #{twinq_forward.1} parent=0 // pred_check
    _
  $region31: #{twinq_forward.1} parent=0 // pred_check_branch
    %37 = sbr.rel (0) target = $region33
  $region32: #{twinq_forward.1} parent=0 // pred_region
    _
  $region33: #{twinq_forward.1} parent=0 // pred_fallthru
    _
  // Predicated region
  $region34: #{twinq_forward.1} parent=0 // pred_check
    _
  $region35: #{twinq_forward.1} parent=0 // pred_check_branch
    %39 = sbr.rel (0) target = $region37
  $region36: #{twinq_forward.1} parent=0 // pred_region
    _
  $region37: #{twinq_forward.1} parent=0 // pred_fallthru
    _
  // Predicated region
  $region38: #{twinq_forward.1} parent=0 // pred_check
    _
  $region39: #{twinq_forward.1} parent=0 // pred_check_branch
    %41 = sbr.rel (0) target = $region41
  $region40: #{twinq_forward.1} parent=0 // pred_region
    _
  $region41: #{twinq_forward.1} parent=0 // pred_fallthru
    _
  // Predicated region
  $region42: #{twinq_forward.1} parent=0 // pred_check
    _
  $region43: #{twinq_forward.1} parent=0 // pred_check_branch
    %43 = sbr.rel (0) target = $region45
  $region44: #{twinq_forward.1} parent=0 // pred_region
    _
  $region45: #{twinq_forward.1} parent=0 // pred_fallthru
    _
  // Predicated region
  $region46: #{twinq_forward.1} parent=0 // pred_check
    _
  $region47: #{twinq_forward.1} parent=0 // pred_check_branch
    %45 = sbr.rel (0) target = $region49
  $region48: #{twinq_forward.1} parent=0 // pred_region
    _
  $region49: #{twinq_forward.1} parent=0 // pred_fallthru
    _
  // Predicated region
  $region50: #{twinq_forward.1} parent=0 // pred_check
    _
  $region51: #{twinq_forward.1} parent=0 // pred_check_branch
    %47 = sbr.rel (0) target = $region53
  $region52: #{twinq_forward.1} parent=0 // pred_region
    _
  $region53: #{twinq_forward.1} parent=0 // pred_fallthru
    _
  %v49 = vld [vmem:[%s0] sm:$0xff]
  %v50 = vpack.c.bf16 %v49, %v49
  %v51 = vld [vmem:[%s1] sm:$0xff]
  %v52 = vpack.c.bf16 %v51, %v51
  %v53 = vld [vmem:[%s2] sm:$0xf]
  %v54 = vld [vmem:[%s2 + $0x4] sm:$0xf]
  %v55 = vld [vmem:[%s2 + $0x8] sm:$0x1]
  %v56 = vld [vmem:[%s3] sm:$0x7]
  %vm57 = vcmask 48128
  %v59 = vsel %vm57, %v52, 0
  %vm61 = vcmask 1042432
  %v63 = vsel %vm61, %v56, 0
  %65 = vmatprep.subr.bf16.mxu0 0
  %66 = vmatpush1.bf16.msra.mxu0 %v63
  %67 = vmatprep.subr.bf16.mxu0 0
  %68 = vmatpush1.bf16.msra.mxu0 0
  %69 = vmatprep.subr.bf16.mxu0 0
  %70 = vmatpush1.bf16.msra.mxu0 0
  %71 = vmatprep.subr.bf16.mxu0 0
  %72 = vmatpush1.bf16.msra.mxu0 0
  %73 = vmatprep.subr.bf16.mxu0 0
  %74 = vmatpush1.bf16.msra.mxu0 0
  %75 = vmatprep.subr.bf16.mxu0 0
  %76 = vmatpush1.bf16.msra.mxu0 0
  %77 = vmatprep.subr.bf16.mxu0 0
  %78 = vmatpush1.bf16.msra.mxu0 0
  %79 = vmatprep.subr.bf16.mxu0 0
  %80 = vmatpush1.bf16.msra.mxu0 0
  %81 = vmatprep.subr.bf16.mxu0 0
  %82 = vmatpush1.bf16.msra.mxu0 0
  %83 = vmatprep.subr.bf16.mxu0 0
  %84 = vmatpush1.bf16.msra.mxu0 0
  %85 = vmatprep.subr.bf16.mxu0 0
  %86 = vmatpush1.bf16.msra.mxu0 0
  %87 = vmatprep.subr.bf16.mxu0 0
  %88 = vmatpush1.bf16.msra.mxu0 0
  %89 = vmatprep.subr.bf16.mxu0 0
  %90 = vmatpush1.bf16.msra.mxu0 0
  %91 = vmatprep.subr.bf16.mxu0 0
  %92 = vmatpush1.bf16.msra.mxu0 0
  %93 = vmatprep.subr.bf16.mxu0 0
  %94 = vmatpush1.bf16.msra.mxu0 0
  %95 = vmatprep.subr.bf16.mxu0 0
  %96 = vmatpush1.bf16.msra.mxu0 0
  %97 = vmatprep.mubr.bf16.mxu0 0
  %98 = vmatmul.mubr.bf16.gmra.mrb[0].mxu0 %v59
  %v99 = vpop.f32.mrb[0].mxu0
  %v100 = vadd.f32 0.0, %v99
  %v101 = vpop.f32.mrb[0].mxu0
  %v102 = vpop.f32.mrb[0].mxu0
  %v103 = vpop.f32.mrb[0].mxu0
  %104 = vdwg.mxu0
  %v108 = vunpack.c.l.b16 %v53
  %v109 = vunpack.c.l.b16 %v54
  %v110 = vunpack.c.l.b16 %v55
  %v111 = vpack.c.b16 %v109, %v108
  %v112 = vpack.c.b16 %v110, %v110
  %vm114 = vcmask 138240
  %v116 = vsel %vm114, %v50, 0
  %vm118 = vcmask 1040384
  %v119 = vsel 0, 4294967295, 65535
  %v120 = vsel %vm118, %v119, 0
  %v122 = vand.u32 %v112, %v120
  %124 = vmatprep.subr.bf16.mxu0 0
  %125 = vmatpush1.bf16.msra.mxu0 %v111
  %126 = vmatprep.subr.bf16.mxu0 0
  %127 = vmatpush1.bf16.msra.mxu0 %v122
  %128 = vmatprep.subr.bf16.mxu0 0
  %129 = vmatpush1.bf16.msra.mxu0 0
  %130 = vmatprep.subr.bf16.mxu0 0
  %131 = vmatpush1.bf16.msra.mxu0 0
  %132 = vmatprep.subr.bf16.mxu0 0
  %133 = vmatpush1.bf16.msra.mxu0 0
  %134 = vmatprep.subr.bf16.mxu0 0
  %135 = vmatpush1.bf16.msra.mxu0 0
  %136 = vmatprep.subr.bf16.mxu0 0
  %137 = vmatpush1.bf16.msra.mxu0 0
  %138 = vmatprep.subr.bf16.mxu0 0
  %139 = vmatpush1.bf16.msra.mxu0 0
  %140 = vmatprep.subr.bf16.mxu0 0
  %141 = vmatpush1.bf16.msra.mxu0 0
  %142 = vmatprep.subr.bf16.mxu0 0
  %143 = vmatpush1.bf16.msra.mxu0 0
  %144 = vmatprep.subr.bf16.mxu0 0
  %145 = vmatpush1.bf16.msra.mxu0 0
  %146 = vmatprep.subr.bf16.mxu0 0
  %147 = vmatpush1.bf16.msra.mxu0 0
  %148 = vmatprep.subr.bf16.mxu0 0
  %149 = vmatpush1.bf16.msra.mxu0 0
  %150 = vmatprep.subr.bf16.mxu0 0
  %151 = vmatpush1.bf16.msra.mxu0 0
  %152 = vmatprep.subr.bf16.mxu0 0
  %153 = vmatpush1.bf16.msra.mxu0 0
  %154 = vmatprep.subr.bf16.mxu0 0
  %155 = vmatpush1.bf16.msra.mxu0 0
  %156 = vmatprep.mubr.bf16.mxu0 0
  %157 = vmatmul.mubr.bf16.gmra.mrb[0].mxu0 %v116
  %v158 = vpop.f32.mrb[0].mxu0
  %v159 = vadd.f32 %v100, %v158
  %v160 = vpop.f32.mrb[0].mxu0
  %v161 = vpop.f32.mrb[0].mxu0
  %v162 = vpop.f32.mrb[0].mxu0
  %163 = vdwg.mxu0
  %v164 = vld [vmem:[%s4] sm:$0x1]
  %v166 = vlaneseq
  %v167 = vshrl.u32 %v166, 7
  %v168 = vsub.s32 0, %v167
  %v169 = vrot.slane %v164, %v168
  %v171 = vadd.f32 %v159, %v169
  %v172 = vmax.f32 %v171, 0.0
  %v173 = vpack.c.bf16 %v172, %v172
  %v174 = vld [vmem:[%s5] sm:$0xf]
  %v175 = vld [vmem:[%s5 + $0x4] sm:$0xf]
  %v176 = vld [vmem:[%s5 + $0x8] sm:$0xf]
  %v177 = vld [vmem:[%s5 + $0xc] sm:$0xf]
  %v178 = vld [vmem:[%s6] sm:$0x1]
  %v179 = vld [vmem:[%s9] sm:$0x1]
  %v180 = vld [vmem:[#allocation2] sm:$0x1]
  %v182 = vlaneseq
  %v183 = vshrl.u32 %v182, 7
  %v184 = vsub.s32 0, %v183
  %v185 = vrot.slane %v178, %v184
  %v191 = vunpack.c.l.b16 %v174
  %v192 = vunpack.c.l.b16 %v175
  %v193 = vunpack.c.l.b16 %v176
  %v194 = vunpack.c.l.b16 %v177
  %v195 = vpack.c.b16 %v192, %v191
  %v196 = vpack.c.b16 %v194, %v193
  %vm199 = vcmask 261120
  %v201 = vsel %vm199, %v173, 0
  %203 = vmatprep.subr.bf16.mxu0 0
  %204 = vmatpush1.bf16.msra.mxu0 %v195
  %205 = vmatprep.subr.bf16.mxu0 0
  %206 = vmatpush1.bf16.msra.mxu0 %v196
  %207 = vmatprep.subr.bf16.mxu0 0
  %208 = vmatpush1.bf16.msra.mxu0 0
  %209 = vmatprep.subr.bf16.mxu0 0
  %210 = vmatpush1.bf16.msra.mxu0 0
  %211 = vmatprep.subr.bf16.mxu0 0
  %212 = vmatpush1.bf16.msra.mxu0 0
  %213 = vmatprep.subr.bf16.mxu0 0
  %214 = vmatpush1.bf16.msra.mxu0 0
  %215 = vmatprep.subr.bf16.mxu0 0
  %216 = vmatpush1.bf16.msra.mxu0 0
  %217 = vmatprep.subr.bf16.mxu0 0
  %218 = vmatpush1.bf16.msra.mxu0 0
  %219 = vmatprep.subr.bf16.mxu0 0
  %220 = vmatpush1.bf16.msra.mxu0 0
  %221 = vmatprep.subr.bf16.mxu0 0
  %222 = vmatpush1.bf16.msra.mxu0 0
  %223 = vmatprep.subr.bf16.mxu0 0
  %224 = vmatpush1.bf16.msra.mxu0 0
  %225 = vmatprep.subr.bf16.mxu0 0
  %226 = vmatpush1.bf16.msra.mxu0 0
  %227 = vmatprep.subr.bf16.mxu0 0
  %228 = vmatpush1.bf16.msra.mxu0 0
  %229 = vmatprep.subr.bf16.mxu0 0
  %230 = vmatpush1.bf16.msra.mxu0 0
  %231 = vmatprep.subr.bf16.mxu0 0
  %232 = vmatpush1.bf16.msra.mxu0 0
  %233 = vmatprep.subr.bf16.mxu0 0
  %234 = vmatpush1.bf16.msra.mxu0 0
  %235 = vmatprep.mubr.bf16.mxu0 0
  %236 = vmatmul.mubr.bf16.gmra.mrb[0].mxu0 %v201
  %v237 = vpop.f32.mrb[0].mxu0
  %v238 = vadd.f32 %v185, %v237
  %v239 = vpop.f32.mrb[0].mxu0
  %v240 = vpop.f32.mrb[0].mxu0
  %v241 = vpop.f32.mrb[0].mxu0
  %242 = vdwg.mxu0
  %v243 = vmax.f32 %v238, 0.0
  %v245 = vlaneseq
  %v246 = vshrl.u32 %v245, 7
  %v247 = vsub.s32 0, %v246
  %v248 = vrot.slane %v179, %v247
  %v250 = vmul.f32 %v243, %v248
  %v251 = vsel %vm199, %v250, 0.0
  %252 = vadd.xlane.f32.xlu0 %v251
  %v253 = vpop.xlane.xlu0 %252
  %v255 = vlaneseq
  %v256 = vshrl.u32 %v255, 7
  %v257 = vsub.s32 0, %v256
  %v258 = vrot.slane %v180, %v257
  %v260 = vadd.f32 %v253, %v258
  %v261 = vld [vmem:[%s7] sm:$0xf]
  %v262 = vld [vmem:[%s7 + $0x4] sm:$0xf]
  %v263 = vld [vmem:[%s7 + $0x8] sm:$0xf]
  %v264 = vld [vmem:[%s7 + $0xc] sm:$0xf]
  %v265 = vld [vmem:[%s8] sm:$0x1]
  %v266 = vld [vmem:[%s11] sm:$0x1]
  %v267 = vld [vmem:[#allocation3] sm:$0x1]
  %v269 = vlaneseq
  %v270 = vshrl.u32 %v269, 7
  %v271 = vsub.s32 0, %v270
  %v272 = vrot.slane %v265, %v271
  %275 = vrot.lane.b32.xlu0 %v173, 96
  %v276 = vpop.permute.xlu0 %275
  %v281 = vunpack.c.l.b16 %v261
  %v282 = vunpack.c.l.b16 %v262
  %v283 = vunpack.c.l.b16 %v263
  %v284 = vunpack.c.l.b16 %v264
  %v285 = vpack.c.b16 %v282, %v281
  %v286 = vpack.c.b16 %v284, %v283
  %v290 = vsel %vm199, %v276, 0
  %292 = vmatprep.subr.bf16.mxu0 0
  %293 = vmatpush1.bf16.msra.mxu0 %v285
  %294 = vmatprep.subr.bf16.mxu0 0
  %295 = vmatpush1.bf16.msra.mxu0 %v286
  %296 = vmatprep.subr.bf16.mxu0 0
  %297 = vmatpush1.bf16.msra.mxu0 0
  %298 = vmatprep.subr.bf16.mxu0 0
  %299 = vmatpush1.bf16.msra.mxu0 0
  %300 = vmatprep.subr.bf16.mxu0 0
  %301 = vmatpush1.bf16.msra.mxu0 0
  %302 = vmatprep.subr.bf16.mxu0 0
  %303 = vmatpush1.bf16.msra.mxu0 0
  %304 = vmatprep.subr.bf16.mxu0 0
  %305 = vmatpush1.bf16.msra.mxu0 0
  %306 = vmatprep.subr.bf16.mxu0 0
  %307 = vmatpush1.bf16.msra.mxu0 0
  %308 = vmatprep.subr.bf16.mxu0 0
  %309 = vmatpush1.bf16.msra.mxu0 0
  %310 = vmatprep.subr.bf16.mxu0 0
  %311 = vmatpush1.bf16.msra.mxu0 0
  %312 = vmatprep.subr.bf16.mxu0 0
  %313 = vmatpush1.bf16.msra.mxu0 0
  %314 = vmatprep.subr.bf16.mxu0 0
  %315 = vmatpush1.bf16.msra.mxu0 0
  %316 = vmatprep.subr.bf16.mxu0 0
  %317 = vmatpush1.bf16.msra.mxu0 0
  %318 = vmatprep.subr.bf16.mxu0 0
  %319 = vmatpush1.bf16.msra.mxu0 0
  %320 = vmatprep.subr.bf16.mxu0 0
  %321 = vmatpush1.bf16.msra.mxu0 0
  %322 = vmatprep.subr.bf16.mxu0 0
  %323 = vmatpush1.bf16.msra.mxu0 0
  %324 = vmatprep.mubr.bf16.mxu0 0
  %325 = vmatmul.mubr.bf16.gmra.mrb[0].mxu0 %v290
  %v326 = vpop.f32.mrb[0].mxu0
  %v327 = vadd.f32 %v272, %v326
  %v328 = vpop.f32.mrb[0].mxu0
  %v329 = vpop.f32.mrb[0].mxu0
  %v330 = vpop.f32.mrb[0].mxu0
  %331 = vdwg.mxu0
  %v332 = vmax.f32 %v327, 0.0
  %v334 = vlaneseq
  %v335 = vshrl.u32 %v334, 7
  %v336 = vsub.s32 0, %v335
  %v337 = vrot.slane %v266, %v336
  %v339 = vmul.f32 %v332, %v337
  %v340 = vsel %vm199, %v339, 0.0
  %341 = vadd.xlane.f32.xlu0 %v340
  %v342 = vpop.xlane.xlu0 %341
  %v344 = vlaneseq
  %v345 = vshrl.u32 %v344, 7
  %v346 = vsub.s32 0, %v345
  %v347 = vrot.slane %v267, %v346
  %v349 = vadd.f32 %v342, %v347
  %v350 = vmin.f32 %v260, %v349
  %vm351 = vcmask 7168
  %352 = vst.msk [vmem:[%s13] sm:$0xff] %vm351, %v350
  // Predicated region
  $region54: #{twinq_forward.1} parent=0 // pred_check
    _
  $region55: #{twinq_forward.1} parent=0 // pred_check_branch
    %354 = sbr.rel (0) target = $region57
  $region56: #{twinq_forward.1} parent=0 // pred_region
    _
  $region57: #{twinq_forward.1} parent=0 // pred_fallthru
    _
  // Predicated region
  $region58: #{twinq_forward.1} parent=0 // pred_check
    _
  $region59: #{twinq_forward.1} parent=0 // pred_check_branch
    %356 = sbr.rel (0) target = $region61
  $region60: #{twinq_forward.1} parent=0 // pred_region
    _
  $region61: #{twinq_forward.1} parent=0 // pred_fallthru
    _

</llo_original>
